<compile_context>
chip_gen: v5e
topology: v5e:2x2
jax: 0.10.0
libtpu: 0.0.40
codegen_flags: <defaults>
</compile_context>

<pallas_src>
import math

import jax
import jax.numpy as jnp
from jax.experimental import pallas as pl
from jax.experimental.pallas import tpu as pltpu


def attention_gcn_kernel(values_ref, freq_ref, packed_ref, y_ref):
    # values_ref: (N, 128) f32 node embeddings
    # freq_ref:   (N, 1)   f32 per-node frequency (lane-broadcast in-kernel)
    # packed_ref: (136, 128) f32 packed parameters:
    #   rows [0:128]        : fc1 weight, zero-padded to 128 output lanes
    #   row  128, lanes :L1 : fc1 bias (zeros beyond L1)
    #   row  129, lanes :L1 : keys weight / sqrt(2) (zeros beyond L1)
    #   row  130            : output weight row (128 lanes)
    #   row  131, lane 0    : output bias
    v = values_ref[...]                                                  # (N, 128)
    w1 = packed_ref[0:128, :]                                            # (128, 128)
    tail = packed_ref[128:136, :]                                        # (8, 128)
    b1 = tail[0:1, :]                                                    # (1, 128)
    wk = tail[1:2, :]                                                    # (1, 128), pre-scaled
    wout = tail[2:3, :]                                                  # (1, 128)
    bout = tail[3:4, 0:1]                                                # (1, 1)

    # queries = relu(fc1(values)) -- the only MXU matmul (lane-dense 128-wide).
    # Padded output lanes stay exactly zero (zero weight cols + zero bias).
    q = jnp.dot(v, w1, preferred_element_type=jnp.float32)               # (N, 128)
    q = jnp.maximum(q + b1, 0.0)

    # scores = softmax(keys(queries)^T / sqrt(2))  -- rank-1 projection on VPU + XLU
    # (wk already carries the 1/sqrt(2); bk dropped: constant shift cancels in softmax)
    s = jnp.sum(q * wk, axis=-1, keepdims=True)                          # (N, 1)
    m = jnp.max(s, keepdims=True)                                        # (1, 1)
    e = jnp.exp(s - m)                                                   # (N, 1)
    denom = jnp.sum(e, keepdims=True)                                    # (1, 1)
    scores = e * pl.reciprocal(denom, approx=True)                       # (N, 1)

    # y = output(scores @ (freq * values)) fused:
    #   p_n = freq_n * (v_n . wout);  y = sum_n scores_n * p_n + bout
    p = jnp.sum(v * wout, axis=-1, keepdims=True) * freq_ref[...]        # (N, 1)
    y = jnp.sum(scores * p, keepdims=True) + bout                        # (1, 1)
    y_ref[...] = y.astype(y_ref.dtype)


def pack_params(w1, b1, wk, bk, wout, bout):
    """One-time parameter transform:
       - zero-pad fc1 (128, L1) -> (128, 128) so all in-kernel math is lane-dense,
       - fold 1/sqrt(2) into the keys weight,
       - drop bk (pre-softmax constant, cancelled by the softmax),
       - pack everything into a single (136, 128) VMEM-friendly f32 buffer."""
    del bk  # mathematically a no-op before softmax
    D, L1 = w1.shape
    assert D == 128, "fc1 input dim is hard-coded to 128 in the module"
    packed = jnp.zeros((D + 8, 128), jnp.float32)
    packed = packed.at[:D, :L1].set(w1.astype(jnp.float32))
    packed = packed.at[D, :L1].set(b1.reshape(-1).astype(jnp.float32))
    packed = packed.at[D + 1, :L1].set(
        wk.reshape(-1).astype(jnp.float32) * (1.0 / math.sqrt(2.0)))
    packed = packed.at[D + 2, :].set(wout.reshape(-1).astype(jnp.float32))
    packed = packed.at[D + 3, 0].set(jnp.float32(bout.reshape(())))
    return packed


def attention_gcn_forward(frequencies, node_embedding_vector, packed_params):
    """frequencies: per-node frequencies, shape (1, N, 1) (or a (1, N, 128)
    per-node broadcast); node_embedding_vector: (1, N, 128). Returns (1, 1)."""
    values = jnp.squeeze(node_embedding_vector, axis=0).astype(jnp.float32)  # (N, 128)
    freq = jnp.squeeze(frequencies, axis=0)                                  # (N, 1) or (N, D)
    # Per-node frequency column; the PyTorch broadcast `frequencies * values`
    # is realized as a lane-broadcast inside the kernel.
    freq_col = freq[:, :1].astype(jnp.float32)                               # (N, 1)

    full = lambda shape: pl.BlockSpec(shape, lambda: (0,) * len(shape),
                                      memory_space=pltpu.MemorySpace.VMEM)
    return pl.pallas_call(
        attention_gcn_kernel,
        out_shape=jax.ShapeDtypeStruct((1, 1), jnp.float32),
        grid=(),
        in_specs=[full(values.shape), full(freq_col.shape),
                  full(packed_params.shape)],
        out_specs=full((1, 1)),
    )(values, freq_col, packed_params)


def reference_forward(frequencies, node_embedding_vector, params):
    """Pure-JAX reference mirroring the PyTorch forward (eval mode)."""
    values = node_embedding_vector                                    # (1, N, 128)
    queries = jax.nn.relu(
        jnp.einsum("bnd,dl->bnl", values, params["w1"])
        + params["b1"].reshape(1, 1, -1))
    mat1 = jnp.einsum("bnl,lo->bno", queries, params["wk"]) + params["bk"].reshape(())
    mat1 = jnp.squeeze(mat1, 0)                                       # (N, 1)
    mat2 = jnp.transpose(mat1, (1, 0)) / math.sqrt(2.0)               # (1, N)
    scores = jax.nn.softmax(mat2, axis=1)                             # (1, N)
    v = jnp.squeeze(values, 0)                                        # (N, 128)
    freq = jnp.broadcast_to(jnp.squeeze(frequencies, axis=0), v.shape)
    freq_values = freq * v
    values_scores = jnp.matmul(scores, freq_values)                   # (1, 128)
    return jnp.matmul(values_scores, params["wout"]) + params["bout"].reshape(())


if __name__ == "__main__":
    key = jax.random.PRNGKey(0)
    N = 16      # nodes_number
    D = 128     # fc1 input dim (hard-coded to 128 in the module)
    L1 = 32     # RECEIVED_PARAMS['layer_1']

    keys = jax.random.split(key, 8)

    # Deterministic parameter init (PyTorch nn.Linear-style uniform bounds).
    def lin_init(kw, kb, fan_in, fan_out):
        bound = 1.0 / math.sqrt(fan_in)
        w = jax.random.uniform(kw, (fan_in, fan_out), jnp.float32, -bound, bound)
        b = jax.random.uniform(kb, (fan_out,), jnp.float32, -bound, bound)
        return w, b

    w1, b1 = lin_init(keys[0], keys[1], D, L1)      # fc1: Linear(128, layer_1)
    wk, bk = lin_init(keys[2], keys[3], L1, 1)      # keys: Linear(layer_1, 1)
    wout, bout = lin_init(keys[4], keys[5], D, 1)   # output: Linear(128, 1)
    params = {"w1": w1, "b1": b1, "wk": wk, "bk": bk, "wout": wout, "bout": bout}

    packed = pack_params(w1, b1, wk, bk, wout, bout)   # one-time transform

    # Inputs: node embeddings (1, N, 128); per-node frequencies (1, N, 1).
    node_embedding_vector = jax.random.normal(keys[6], (1, N, D), jnp.float32)
    per_node_freq = jax.random.uniform(keys[7], (1, N, 1), jnp.float32)

    y = attention_gcn_forward(per_node_freq, node_embedding_vector, packed)
    y = jax.block_until_ready(y)

    y_ref = reference_forward(per_node_freq, node_embedding_vector, params)
    assert y.shape == (1, 1)
    assert jnp.allclose(y, y_ref, atol=1e-4, rtol=1e-4), (y, y_ref)

    print("KERNEL_OK")
</pallas_src>

<mosaic_0001>
module attributes {stable_mosaic.version = 11 : i64} {
  func.func @attention_gcn_kernel(%arg0: memref<16x128xf32, #tpu.memory_space<vmem>>, %arg1: memref<16x1xf32, #tpu.memory_space<vmem>>, %arg2: memref<136x128xf32, #tpu.memory_space<vmem>>, %arg3: memref<1x1xf32, #tpu.memory_space<vmem>>) attributes {dimension_semantics = [], scalar_prefetch = 0 : i64, scratch_operands = 0 : i64, tpu.core_type = #tpu.core_type<tc>} {
    %c0 = arith.constant 0 : index
    %c0_0 = arith.constant 0 : index
    %0 = vector.load %arg0[%c0, %c0_0] : memref<16x128xf32, #tpu.memory_space<vmem>>, vector<16x128xf32>
    %c0_1 = arith.constant 0 : index
    %c0_2 = arith.constant 0 : index
    %1 = vector.load %arg2[%c0_1, %c0_2] : memref<136x128xf32, #tpu.memory_space<vmem>>, vector<128x128xf32>
    %c128 = arith.constant 128 : index
    %c0_3 = arith.constant 0 : index
    %2 = vector.load %arg2[%c128, %c0_3] : memref<136x128xf32, #tpu.memory_space<vmem>>, vector<8x128xf32>
    %3 = vector.extract_strided_slice %2 {offsets = [0, 0], sizes = [1, 128], strides = [1, 1]} : vector<8x128xf32> to vector<1x128xf32>
    %4 = vector.extract_strided_slice %2 {offsets = [1, 0], sizes = [1, 128], strides = [1, 1]} : vector<8x128xf32> to vector<1x128xf32>
    %5 = vector.extract_strided_slice %2 {offsets = [2, 0], sizes = [1, 128], strides = [1, 1]} : vector<8x128xf32> to vector<1x128xf32>
    %6 = vector.extract_strided_slice %2 {offsets = [3, 0], sizes = [1, 1], strides = [1, 1]} : vector<8x128xf32> to vector<1x1xf32>
    %cst = arith.constant dense<0.000000e+00> : vector<16x128xf32>
    %7 = tpu.matmul %0, %1, %cst {dimension_numbers = #tpu.dot_dimension_numbers<[1], [0], [0], [1], [0, 0, 1, 1], [], []>} : vector<16x128xf32>, vector<128x128xf32>, vector<16x128xf32> -> vector<16x128xf32>
    %8 = vector.broadcast %3 : vector<1x128xf32> to vector<16x128xf32>
    %9 = arith.addf %7, %8 : vector<16x128xf32>
    %cst_4 = arith.constant 0.000000e+00 : f32
    %10 = vector.broadcast %cst_4 : f32 to vector<16x128xf32>
    %11 = arith.maximumf %9, %10 : vector<16x128xf32>
    %12 = vector.broadcast %4 : vector<1x128xf32> to vector<16x128xf32>
    %13 = arith.mulf %11, %12 : vector<16x128xf32>
    %cst_5 = arith.constant dense<0.000000e+00> : vector<16xf32>
    %14 = vector.multi_reduction <add>, %13, %cst_5 [1] : vector<16x128xf32> to vector<16xf32>
    %15 = vector.shape_cast %14 : vector<16xf32> to vector<16x1xf32>
    %16 = vector.shape_cast %15 : vector<16x1xf32> to vector<1x16x1xf32>
    %cst_6 = arith.constant dense<0xFF800000> : vector<1xf32>
    %17 = vector.multi_reduction <maximumf>, %16, %cst_6 [1, 2] : vector<1x16x1xf32> to vector<1xf32>
    %18 = vector.shape_cast %17 : vector<1xf32> to vector<1x1x1xf32>
    %19 = vector.extract %18[0, 0, 0] : f32 from vector<1x1x1xf32>
    %20 = vector.broadcast %19 : f32 to vector<1x1xf32>
    %21 = vector.broadcast %20 : vector<1x1xf32> to vector<16x1xf32>
    %22 = arith.subf %15, %21 : vector<16x1xf32>
    %23 = math.exp %22 : vector<16x1xf32>
    %24 = vector.shape_cast %23 : vector<16x1xf32> to vector<1x16x1xf32>
    %cst_7 = arith.constant dense<0.000000e+00> : vector<1xf32>
    %25 = vector.multi_reduction <add>, %24, %cst_7 [1, 2] : vector<1x16x1xf32> to vector<1xf32>
    %26 = vector.shape_cast %25 : vector<1xf32> to vector<1x1x1xf32>
    %27 = vector.extract %26[0, 0, 0] : f32 from vector<1x1x1xf32>
    %28 = vector.broadcast %27 : f32 to vector<1x1xf32>
    %29 = tpu.reciprocal %28 {approx = true} : vector<1x1xf32> -> vector<1x1xf32>
    %30 = vector.broadcast %29 : vector<1x1xf32> to vector<16x1xf32>
    %31 = arith.mulf %23, %30 : vector<16x1xf32>
    %32 = vector.broadcast %5 : vector<1x128xf32> to vector<16x128xf32>
    %33 = arith.mulf %0, %32 : vector<16x128xf32>
    %cst_8 = arith.constant dense<0.000000e+00> : vector<16xf32>
    %34 = vector.multi_reduction <add>, %33, %cst_8 [1] : vector<16x128xf32> to vector<16xf32>
    %35 = vector.shape_cast %34 : vector<16xf32> to vector<16x1xf32>
    %c0_9 = arith.constant 0 : index
    %c0_10 = arith.constant 0 : index
    %36 = vector.load %arg1[%c0_9, %c0_10] : memref<16x1xf32, #tpu.memory_space<vmem>>, vector<16x1xf32>
    %37 = arith.mulf %35, %36 : vector<16x1xf32>
    %38 = arith.mulf %31, %37 : vector<16x1xf32>
    %39 = vector.shape_cast %38 : vector<16x1xf32> to vector<1x16x1xf32>
    %cst_11 = arith.constant dense<0.000000e+00> : vector<1xf32>
    %40 = vector.multi_reduction <add>, %39, %cst_11 [1, 2] : vector<1x16x1xf32> to vector<1xf32>
    %41 = vector.shape_cast %40 : vector<1xf32> to vector<1x1x1xf32>
    %42 = vector.extract %41[0, 0, 0] : f32 from vector<1x1x1xf32>
    %43 = vector.broadcast %42 : f32 to vector<1x1xf32>
    %44 = arith.addf %43, %6 : vector<1x1xf32>
    %c0_12 = arith.constant 0 : index
    %c0_13 = arith.constant 0 : index
    %45 = vector.load %arg3[%c0_12, %c0_13] : memref<1x1xf32, #tpu.memory_space<vmem>>, vector<1x1xf32>
    tpu.vector_store %arg3[%c0_12, %c0_13], %44 {strides = array<i32>} : memref<1x1xf32, #tpu.memory_space<vmem>>, vector<1x1xf32>,
    return
  }
}

</mosaic_0001>

<llo_original>
// kernel: tpu_custom_call.1
$region0: #{tpu_custom_call.1}
  #allocation0 [shape = 'u32[]', space=smem, size = 0x4, offset = 0x4, fixed_abs, tag = 'smem constant byte address 0x4 - core index']
  #allocation1 [shape = 'u32[72,128]{1,0:T(1,128)}', space=vmem, size = 0x9000, scoped, tag = 'internal scratch']
  %s0 = inlined_call_operand.vmem [shape: f32[16,128], index: 0, kind: input, shape index: {}]
  %s1 = inlined_call_operand.vmem [shape: f32[16,1], index: 1, kind: input, shape index: {}]
  %s2 = inlined_call_operand.hbm [shape: f32[136,128], index: 2, kind: input, shape index: {}]
  %s3 = inlined_call_operand.hbm [shape: f32[1,1], index: 3, kind: output, shape index: {}]
  %s4 = sld [smem:[#allocation0]]
  $region26: #{tpu_custom_call.1} parent=0
    _
  %s6 = ssub.s32 1, %s4
  %s7 = scalar_select 0, %s6, %s4
  $region1: #{tpu_custom_call.1} parent=0
    #allocation2 [shape = 'u8[69632]{0}', space=vmem, size = 0x11000, scoped, tag = 'input window, operand 2, single buffered']
    #allocation3 [shape = 's32[1]{0}', space=sflag, size = 0x4, scoped, tag = 'scoped memory for tpu_custom_call.1']
    #allocation4 [shape = 's32[1]{0}', space=sflag, size = 0x4, scoped, tag = 'scoped memory for tpu_custom_call.1']
    #allocation5 [shape = 'u8[512]{0}', space=vmem, size = 0x400, scoped, tag = 'output window, operand 0, single buffered']
    %8 = vsyncpa [#allocation3], 0
    %9 = vsyncpa [#allocation4], 0
    // Predicated region
    $region2: #{tpu_custom_call.1} parent=1 // pred_check
      _
    $region3: #{tpu_custom_call.1} parent=1 // pred_check_branch
      %11 = sbr.rel (0) target = $region5
    $region4: #{tpu_custom_call.1} parent=1 // pred_region
      _
    $region5: #{tpu_custom_call.1} parent=1 // pred_fallthru
      _
    // Predicated region
    $region6: #{tpu_custom_call.1} parent=1 // pred_check
      _
    $region7: #{tpu_custom_call.1} parent=1 // pred_check_branch
      %13 = sbr.rel (0) target = $region9
    $region8: #{tpu_custom_call.1} parent=1 // pred_region
      _
    $region9: #{tpu_custom_call.1} parent=1 // pred_fallthru
      _
    // Predicated region
    $region10: #{tpu_custom_call.1} parent=1 // pred_check
      _
    $region11: #{tpu_custom_call.1} parent=1 // pred_check_branch
      %15 = sbr.rel (0) target = $region13
    $region12: #{tpu_custom_call.1} parent=1 // pred_region
      %17 = vsyncadd [#allocation3], 0
      %s18 = sshll.u32 %s2, 4
      %s19 = int_to_ptr.hbm [resolvable:$true] %s18
      %s20 = sshll.u32 [#allocation2], 4
      %s21 = int_to_ptr.vmem [resolvable:$true] %s20
      %26 = dma.hbm_to_vmem [thread:$0]  %s19, 2176, %s21, [#allocation3], 128, 128, 8
    $region13: #{tpu_custom_call.1} parent=1 // pred_fallthru
      _
    // Predicated region
    $region14: #{tpu_custom_call.1} parent=1 // pred_check
      _
    $region15: #{tpu_custom_call.1} parent=1 // pred_check_branch
      %28 = sbr.rel (0) target = $region17
    $region16: #{tpu_custom_call.1} parent=1 // pred_region
      %30 = dma.done [#allocation3], 2176
    $region17: #{tpu_custom_call.1} parent=1 // pred_fallthru
      _
    %v31 = vld [vmem:[%s0] sm:$0xff]
    %v32 = vld [vmem:[%s0 + $0x8] sm:$0xff]
    %v33 = vld [vmem:[#allocation2] sm:$0xff]
    %v34 = vld [vmem:[#allocation2 + $0x8] sm:$0xff]
    %v35 = vld [vmem:[#allocation2 + $0x10] sm:$0xff]
    %v36 = vld [vmem:[#allocation2 + $0x18] sm:$0xff]
    %v37 = vld [vmem:[#allocation2 + $0x20] sm:$0xff]
    %v38 = vld [vmem:[#allocation2 + $0x28] sm:$0xff]
    %v39 = vld [vmem:[#allocation2 + $0x30] sm:$0xff]
    %v40 = vld [vmem:[#allocation2 + $0x38] sm:$0xff]
    %v41 = vld [vmem:[#allocation2 + $0x40] sm:$0xff]
    %v42 = vld [vmem:[#allocation2 + $0x48] sm:$0xff]
    %v43 = vld [vmem:[#allocation2 + $0x50] sm:$0xff]
    %v44 = vld [vmem:[#allocation2 + $0x58] sm:$0xff]
    %v45 = vld [vmem:[#allocation2 + $0x60] sm:$0xff]
    %v46 = vld [vmem:[#allocation2 + $0x68] sm:$0xff]
    %v47 = vld [vmem:[#allocation2 + $0x70] sm:$0xff]
    %v48 = vld [vmem:[#allocation2 + $0x78] sm:$0xff]
    %v49 = vld [vmem:[#allocation2 + $0x80] sm:$0xff]
    %v50 = vperm.slane %v49, 0
    %51 = vmatpush.msra.mxu0 %v48
    %52 = vmatpush.msra.mxu0 %v47
    %53 = vmatpush.msra.mxu0 %v46
    %54 = vmatpush.msra.mxu0 %v45
    %55 = vmatpush.msra.mxu0 %v44
    %56 = vmatpush.msra.mxu0 %v43
    %57 = vmatpush.msra.mxu0 %v42
    %58 = vmatpush.msra.mxu0 %v41
    %59 = vmatpush.msra.mxu0 %v40
    %60 = vmatpush.msra.mxu0 %v39
    %61 = vmatpush.msra.mxu0 %v38
    %62 = vmatpush.msra.mxu0 %v37
    %63 = vmatpush.msra.mxu0 %v36
    %64 = vmatpush.msra.mxu0 %v35
    %65 = vmatpush.msra.mxu0 %v34
    %66 = vmatpush.msra.mxu0 %v33
    %67 = vmatmul.f32.gmra.mxu0 %v31
    %v68 = vpop.f32.mrf.mxu0
    %v69 = vadd.f32 %v50, %v68
    %70 = vmatmul.f32.gmra.mxu0 %v32
    %v71 = vpop.f32.mrf.mxu0
    %v72 = vadd.f32 %v50, %v71
    %73 = vdwg.mxu0
    %v74 = vmax.f32 %v69, 0.0
    %v75 = vmax.f32 %v72, 0.0
    %v76 = vperm.slane %v49, 1
    %v77 = vmul.f32 %v74, %v76
    %v78 = vmul.f32 %v75, %v76
    %79 = vadd.xlane.f32.xlu0 %v77
    %v80 = vpop.xlane.xlu0 %79
    %81 = vadd.xlane.f32.xlu0 %v78
    %v82 = vpop.xlane.xlu0 %81
    %v83 = vmax.f32 %v80, %v82
    %v84 = vrot.slane %v83, 4
    %v85 = vmax.f32 %v83, %v84
    %v86 = vrot.slane %v85, 2
    %v87 = vmax.f32 %v85, %v86
    %v88 = vrot.slane %v87, 1
    %v89 = vmax.f32 %v87, %v88
    %s90 = vtos %v89
    %v91 = vstv %s90
    %v92 = vsub.f32 %v80, %v91
    %v93 = vsub.f32 %v82, %v91
    %v94 = vmul.f32 %v92, 1.442695
    %v95 = vpow.pop %v94
    %v96 = vmul.f32 %v93, 1.442695
    %v97 = vpow.pop %v96
    %vm98 = vcmask 7168
    %v99 = vsel %vm98, %v95, 0.0
    %v100 = vsel %vm98, %v97, 0.0
    %v101 = vadd.f32 %v99, %v100
    %102 = vadd.xlane.f32.xlu0 %v101
    %v103 = vpop.xlane.xlu0 %102
    %v104 = vrot.slane %v103, 4
    %v105 = vadd.f32 %v103, %v104
    %v106 = vrot.slane %v105, 2
    %v107 = vadd.f32 %v105, %v106
    %v108 = vrot.slane %v107, 1
    %v109 = vadd.f32 %v107, %v108
    %s110 = vtos %v109
    %v111 = vstv %s110
    %v112 = vrcp.pop %v111
    %v113 = vmul.f32 %v95, %v112
    %v114 = vmul.f32 %v97, %v112
    %v115 = vperm.slane %v49, 2
    %v116 = vmul.f32 %v31, %v115
    %v117 = vmul.f32 %v32, %v115
    %118 = vadd.xlane.f32.xlu0 %v116
    %v119 = vpop.xlane.xlu0 %118
    %120 = vadd.xlane.f32.xlu0 %v117
    %v121 = vpop.xlane.xlu0 %120
    %v122 = vld [vmem:[%s1] sm:$0xff]
    %v123 = vld [vmem:[%s1 + $0x8] sm:$0xff]
    %v124 = vmul.f32 %v119, %v122
    %v125 = vmul.f32 %v121, %v123
    %v126 = vmul.f32 %v113, %v124
    %v127 = vmul.f32 %v114, %v125
    %v128 = vsel %vm98, %v126, 0.0
    %v129 = vsel %vm98, %v127, 0.0
    %v130 = vadd.f32 %v128, %v129
    %131 = vadd.xlane.f32.xlu0 %v130
    %v132 = vpop.xlane.xlu0 %131
    %v133 = vrot.slane %v132, 4
    %v134 = vadd.f32 %v132, %v133
    %v135 = vrot.slane %v134, 2
    %v136 = vadd.f32 %v134, %v135
    %v137 = vrot.slane %v136, 1
    %v138 = vadd.f32 %v136, %v137
    %s139 = vtos %v138
    %v140 = vstv %s139
    %v141 = vadd.f32 %v140, %v49
    %vm142 = vcmask 3075
    %143 = vst.msk [vmem:[#allocation5 - $0x3] sm:$0x8] %vm142, %v141
    // Predicated region
    $region18: #{tpu_custom_call.1} parent=1 // pred_check
      _
    $region19: #{tpu_custom_call.1} parent=1 // pred_check_branch
      %145 = sbr.rel (0) target = $region21
    $region20: #{tpu_custom_call.1} parent=1 // pred_region
      %147 = vsyncadd [#allocation4], 0
      %s149 = sshll.u32 [#allocation5], 4
      %s150 = int_to_ptr.vmem [resolvable:$true] %s149
      %s151 = sshll.u32 %s3, 4
      %s152 = int_to_ptr.hbm [resolvable:$true] %s151
      %154 = dma.vmem_to_hbm [thread:$0]  %s150, 16, %s152, [#allocation4]
    $region21: #{tpu_custom_call.1} parent=1 // pred_fallthru
      _
    // Predicated region
    $region22: #{tpu_custom_call.1} parent=1 // pred_check
      _
    $region23: #{tpu_custom_call.1} parent=1 // pred_check_branch
      %156 = sbr.rel (0) target = $region25
    $region24: #{tpu_custom_call.1} parent=1 // pred_region
      %158 = dma.done [#allocation4], 16
    $region25: #{tpu_custom_call.1} parent=1 // pred_fallthru
      _
    %159 = vsyncpa [#allocation3], 1
    %160 = vsyncpa [#allocation4], 1

</llo_original>
